<compile_context>
chip_gen: v7x
topology: tpu7x:2x2x1
jax: 0.10.0
libtpu: 0.0.40
codegen_flags: <defaults>
</compile_context>

<pallas_src>
import math

import jax
import jax.numpy as jnp
from jax.experimental import pallas as pl
from jax.experimental.pallas import tpu as pltpu


# --------------------------------------------------------------------------
# Primary kernel: zero-copy pass-through. Output buffer is aliased to the
# input buffer; flatten never changes bytes, so the body issues no DMAs.
# --------------------------------------------------------------------------
def _flatten_alias_kernel(x_hbm_ref, o_hbm_ref):
    # Intentionally empty: o_hbm_ref is the same HBM buffer as x_hbm_ref via
    # input_output_aliases, and a contiguous reshape moves no data.
    pass


def flatten_pallas(x):
    """torch Flatten: (B, ...) -> (B, prod(...)), zero HBM traffic."""
    B = x.shape[0]
    N = math.prod(x.shape[1:])
    x2 = x.reshape(B, N)  # contiguous reshape: free view, no data movement
    return pl.pallas_call(
        _flatten_alias_kernel,
        out_shape=jax.ShapeDtypeStruct((B, N), x.dtype),
        in_specs=[pl.BlockSpec(memory_space=pl.ANY)],
        out_specs=pl.BlockSpec(memory_space=pl.ANY),
        input_output_aliases={0: 0},
    )(x2)


# --------------------------------------------------------------------------
# Secondary kernel: materializing copy (when a fresh output buffer is needed).
# --------------------------------------------------------------------------
def _flatten_copy_kernel(x_ref, o_ref):
    o_ref[...] = x_ref[...]


def _sublane_multiple(dtype):
    # Sub-32-bit dtypes pack along sublanes: native tiles are (8,128) f32,
    # (16,128) bf16, (32,128) int8/fp8.
    return max(8, 32 // jnp.dtype(dtype).itemsize)


def flatten_pallas_copy(x, *, tile_bytes=2 << 20):
    """Tiled, sublane+lane-dense HBM->HBM copy of the flattened view."""
    B = x.shape[0]
    N = math.prod(x.shape[1:])
    x2 = x.reshape(B, N)  # free view
    itemsize = jnp.dtype(x.dtype).itemsize
    sub = _sublane_multiple(x.dtype)
    max_elems = max(tile_bytes // itemsize, sub * 128)

    # Lane tile: multiple of 128, capped so even one sublane group of rows
    # stays inside the per-buffer byte budget. Ragged remainder handled by a
    # cdiv grid (masked stores only on the final lane block).
    lane_cap = max(((max_elems // sub) // 128) * 128, 128)
    if N >= 128:
        tn = min((N // 128) * 128, lane_cap)
    else:
        tn = N  # full extent: always a legal block dim (degenerate shapes)

    # Sublane tile: dtype-aware multiple, fills the remaining byte budget so
    # the step count tracks total_bytes / tile_bytes, not the batch size.
    if B <= sub:
        tb = B  # full extent: legal block dim
    else:
        tb = max(sub, min(B // sub, (max_elems // tn) // sub) * sub)

    grid = (pl.cdiv(B, tb), pl.cdiv(N, tn))

    return pl.pallas_call(
        _flatten_copy_kernel,
        out_shape=jax.ShapeDtypeStruct((B, N), x.dtype),
        grid=grid,
        in_specs=[pl.BlockSpec((tb, tn), lambda i, j: (i, j))],
        out_specs=pl.BlockSpec((tb, tn), lambda i, j: (i, j)),
        compiler_params=pltpu.CompilerParams(
            dimension_semantics=("parallel", "parallel")),
        cost_estimate=pl.CostEstimate(
            flops=0, transcendentals=0, bytes_accessed=2 * B * N * itemsize),
    )(x2)


# --------------------------------------------------------------------------
if __name__ == "__main__":
    # Shape consistent with the module's typical use: a small NCHW activation.
    B, C, H, W = 2, 4, 16, 16
    x = jax.random.normal(jax.random.PRNGKey(0), (B, C, H, W), jnp.float32)
    ref = x.reshape(B, -1)

    # Primary zero-copy path.
    out = jax.block_until_ready(jax.jit(flatten_pallas)(x))
    assert out.shape == (B, C * H * W), out.shape
    assert out.dtype == x.dtype, out.dtype
    assert jnp.array_equal(out, ref)

    # Secondary materializing path.
    out2 = jax.block_until_ready(jax.jit(flatten_pallas_copy)(x))
    assert out2.shape == (B, C * H * W), out2.shape
    assert out2.dtype == x.dtype, out2.dtype
    assert jnp.array_equal(out2, ref)

    print("KERNEL_OK")
</pallas_src>

<mosaic_0001>
module attributes {stable_mosaic.version = 11 : i64} {
  func.func @_flatten_alias_kernel(%arg0: memref<2x1024xf32, #tpu.memory_space<any>>, %arg1: memref<2x1024xf32, #tpu.memory_space<any>>) attributes {dimension_semantics = [], scalar_prefetch = 0 : i64, scratch_operands = 0 : i64, tpu.core_type = #tpu.core_type<tc>} {
    return
  }
}

</mosaic_0001>

<llo_original>
// kernel: flatten_pallas.1
$region0: #{flatten_pallas.1}
  #allocation0 [shape = 'u32[]', space=smem, size = 0x4, offset = 0x4, fixed_abs, tag = 'smem constant byte address 0x4 - core index']
  #allocation1 [shape = 'u32[144,128]{1,0:T(1,128)}', space=vmem, size = 0x12000, scoped, tag = 'internal scratch']
  %s0 = inlined_call_operand.hbm [shape: f32[2,1024], index: 0, kind: input, shape index: {}, may-alias: {0,1}]
  %s1 = inlined_call_operand.hbm [shape: f32[2,1024], index: 1, kind: output, shape index: {}, may-alias: {0,1}]
  %s2 = sld [smem:[#allocation0]]
  $region2: #{flatten_pallas.1} parent=0
    _
  %s4 = ssub.s32 1, %s2
  %s5 = scalar_select 0, %s4, %s2

</llo_original>
